<compile_context>
chip_gen: v7x
topology: tpu7x:2x2x1
jax: 0.10.0
libtpu: 0.0.40
codegen_flags: <defaults>
</compile_context>

<pallas_src>
import functools

import jax
import jax.numpy as jnp
from jax import lax
from jax.experimental import pallas as pl
from jax.experimental.pallas import tpu as pltpu

GAMMA = 0
LAMBDA_MIN = 5.0
LAMBDA_MAX = 1500.0
# First-call (it = 0 -> 1) value, used by the pure-JAX reference below.
_IT_FIRST_CALL = 1
_LAMB_FIRST = max(LAMBDA_MIN, LAMBDA_MAX / (1.0 + 0.1 * _IT_FIRST_CALL))
SCALE_FIRST = 1.0 / (1.0 + _LAMB_FIRST)

_LANES = 128
# TODO(synk): add a class-tiled online-LSE (flash-softmax) variant for very
# large C where a single (tm, C) f32 row tile no longer fits v7x's 64 MiB VMEM.


def _angle_loss_kernel(cos_ref, blend_ref, tgt_ref, part_ref, *, n_valid, gamma):
    i = pl.program_id(0)

    cos = cos_ref[...].astype(jnp.float32)    # (TM, C)
    blend_t = blend_ref[...]                  # (TM, 1) f32 (pre-blended target logit)
    tgt = tgt_ref[...]                        # (TM, 1) int32

    tm, c = cos.shape

    col_ids = lax.broadcasted_iota(jnp.int32, (tm, c), 1)
    is_tgt = col_ids == tgt                   # (TM, C) bool — no f32 one-hot

    # Rows past the real batch (partial last block) hold unspecified data:
    # sanitize them BEFORE exp/LSE so inf/NaN can never reach the reduction.
    row_ids = i * tm + lax.broadcasted_iota(jnp.int32, (tm, 1), 0)
    valid = row_ids < n_valid                 # (TM, 1) bool

    # Blended logits: target column takes the pre-blended value, rest keep cos.
    out = jnp.where(is_tgt, blend_t, cos)
    out = jnp.where(valid, out, 0.0)
    blend_safe = jnp.where(valid, blend_t, 0.0)

    # log-softmax statistics only (no full (TM, C) log_softmax kept live).
    row_max = jnp.max(out, axis=1, keepdims=True)                   # (TM, 1)
    lse = jnp.log(jnp.sum(jnp.exp(out - row_max), axis=1, keepdims=True))
    logpt = (blend_safe - row_max) - lse                            # (TM, 1)

    if gamma == 0:
        loss = -logpt                          # focal term == 1; skip the exp
    else:
        pt = jnp.exp(logpt)
        loss = -((1.0 - pt) ** gamma) * logpt

    tile_sum = jnp.sum(jnp.where(valid, loss, 0.0))                 # scalar
    # Lane-dense (1, 1, 128) partial-sum slab; distinct block per grid step so
    # the grid axis stays "parallel" (v7x megacore).
    part_ref[...] = jnp.broadcast_to(tile_sum, part_ref.shape).astype(jnp.float32)


def _vmem_budget_and_capacity():
    """Generation-aware VMEM numbers: budget ~5/8 of physical capacity
    (v7x 64 MiB -> ~40 MiB, v5e/v6e 128 MiB -> ~80 MiB)."""
    try:
        cap = int(pltpu.get_tpu_info().vmem_capacity_bytes)
    except Exception:  # pragma: no cover - conservative fallback (v7x-sized)
        cap = 64 * 1024 * 1024
    return (cap * 5) // 8, cap


def _choose_block_m(n, c, in_itemsize, vmem_budget_bytes):
    """Batch tile sized from the real working set: the double-buffered cos
    stream plus ~2 f32 (tm, C) temporaries. Kept to >= 2 grid steps when the
    batch allows it so both v7x TensorCores get work."""
    bytes_per_row = 2 * c * in_itemsize + 2 * c * 4
    tm = vmem_budget_bytes // max(bytes_per_row, 1)
    tm = int(max(8, min((tm // 8) * 8, 4096)))
    if n >= 16:
        two_tiles = ((-(-n // 2)) + 7) // 8 * 8   # ceil(N/2) rounded up to 8
        tm = min(tm, two_tiles)
    tm = min(tm, ((n + 7) // 8) * 8)
    return max(8, tm)


def angle_loss(cos_theta, phi_theta, target, *, gamma=GAMMA, it=_IT_FIRST_CALL,
               block_m=None):
    """cos_theta, phi_theta: (N, C) float32/bfloat16; target: (N,) int.
    `it` is the forward-call count (PyTorch mutates self.it; here the caller
    tracks it). Returns the scalar AngleLoss."""
    n, c = cos_theta.shape
    in_itemsize = jnp.dtype(cos_theta.dtype).itemsize

    # Per-iteration lambda annealing (touches only (N, 1) data -> no recompile).
    lamb = max(LAMBDA_MIN, LAMBDA_MAX / (1.0 + 0.1 * it))
    scale = 1.0 / (1.0 + lamb)

    tgt = target.reshape(n, 1).astype(jnp.int32)
    # Pre-gather the target column of cos/phi; the full phi matrix never
    # enters the kernel (halves HBM bytes per tile).
    cos_t = jnp.take_along_axis(cos_theta, tgt, axis=1).astype(jnp.float32)
    phi_t = jnp.take_along_axis(phi_theta, tgt, axis=1).astype(jnp.float32)
    blend_t = cos_t + scale * (phi_t - cos_t)          # (N, 1) f32

    vmem_budget, vmem_cap = _vmem_budget_and_capacity()
    tm = block_m if block_m is not None else _choose_block_m(n, c, in_itemsize,
                                                             vmem_budget)
    tm = max(8, (tm // 8) * 8)
    num_tiles = pl.cdiv(n, tm)

    kernel = functools.partial(_angle_loss_kernel, n_valid=n, gamma=gamma)

    # Estimated per-tile VMEM: double-buffered cos stream + 2 f32 temps +
    # tiny side inputs/outputs.
    est_vmem = (2 * tm * c * in_itemsize + 2 * tm * c * 4
                + 4 * tm * 4 + 2 * _LANES * 4)
    compiler_kwargs = dict(dimension_semantics=("parallel",))
    if est_vmem > 16 * 1024 * 1024:   # v5e scoped default is only 16 MiB
        compiler_kwargs["vmem_limit_bytes"] = int(
            min(max(est_vmem * 5 // 4, 32 * 1024 * 1024), vmem_cap * 7 // 8))

    cost = pl.CostEstimate(
        flops=int(5 * n * c),
        transcendentals=int(n * c + n),
        bytes_accessed=int(n * c * in_itemsize + 2 * n * 4
                           + num_tiles * _LANES * 4),
    )

    partials = pl.pallas_call(
        kernel,
        out_shape=jax.ShapeDtypeStruct((num_tiles, 1, _LANES), jnp.float32),
        grid_spec=pltpu.PrefetchScalarGridSpec(
            num_scalar_prefetch=0,
            grid=(num_tiles,),
            in_specs=[
                pl.BlockSpec((tm, c), lambda i: (i, 0)),   # cos_theta
                pl.BlockSpec((tm, 1), lambda i: (i, 0)),   # blend_t
                pl.BlockSpec((tm, 1), lambda i: (i, 0)),   # target
            ],
            out_specs=pl.BlockSpec((1, 1, _LANES), lambda i: (i, 0, 0)),
        ),
        compiler_params=pltpu.CompilerParams(**compiler_kwargs),
        cost_estimate=cost,
    )(cos_theta, blend_t, tgt)

    # Tiny final reduction in JAX: per-tile partial sums -> mean over N rows.
    return jnp.sum(partials[:, 0, 0]) / n


def angle_loss_reference(cos_theta, phi_theta, target, *, scale=SCALE_FIRST,
                         gamma=GAMMA):
    n, c = cos_theta.shape
    index = jax.nn.one_hot(target, c, dtype=jnp.float32)
    output = cos_theta - cos_theta * index * scale + phi_theta * index * scale
    log_sm = jax.nn.log_softmax(output, axis=1)
    logpt = jnp.take_along_axis(log_sm, target.reshape(-1, 1), axis=1).reshape(-1)
    pt = jnp.exp(logpt)
    loss = -1.0 * (1.0 - pt) ** gamma * logpt
    return jnp.mean(loss)


if __name__ == "__main__":
    key = jax.random.PRNGKey(0)
    k1, k2, k3 = jax.random.split(key, 3)

    N, C = 12, 16  # batch (deliberately not a tile multiple), num_classes
    # cos_theta / phi_theta would come from AngleLinear; synthesize in-range.
    cos_theta = jnp.tanh(jax.random.normal(k1, (N, C), dtype=jnp.float32))
    phi_theta = jnp.tanh(jax.random.normal(k2, (N, C), dtype=jnp.float32)) - 1.0
    target = jax.random.randint(k3, (N,), 0, C, dtype=jnp.int32)

    ref = angle_loss_reference(cos_theta, phi_theta, target)

    # block_m=8 -> 2 batch tiles, partial last block: exercises the pipelined
    # grid, megacore-parallel axis and in-kernel row sanitization.
    loss_tiled = angle_loss(cos_theta, phi_theta, target, block_m=8)
    loss_tiled = jax.block_until_ready(loss_tiled)
    assert jnp.allclose(loss_tiled, ref, atol=1e-5, rtol=1e-5), (loss_tiled, ref)

    # Auto tile (single partial block bigger than N): exercises the
    # generation-aware tile-size path.
    loss_auto = angle_loss(cos_theta, phi_theta, target)
    loss_auto = jax.block_until_ready(loss_auto)
    assert jnp.allclose(loss_auto, ref, atol=1e-5, rtol=1e-5), (loss_auto, ref)

    print("KERNEL_OK")
</pallas_src>

<mosaic_0001>
module attributes {stable_mosaic.version = 11 : i64} {
  func.func @_angle_loss_kernel(%arg0: i32, %arg1: memref<8x16xf32, #tpu.memory_space<vmem>>, %arg2: memref<8x1xf32, #tpu.memory_space<vmem>>, %arg3: memref<8x1xi32, #tpu.memory_space<vmem>>, %arg4: memref<1x1x128xf32, #tpu.memory_space<vmem>>) attributes {dimension_semantics = [#tpu.dimension_semantics<parallel>], iteration_bounds = array<i64: 2>, scalar_prefetch = 0 : i64, scratch_operands = 0 : i64, tpu.core_type = #tpu.core_type<tc>, window_params = [{transform_indices = @transform_0, window_bounds = array<i64: 8, 16>}, {transform_indices = @transform_1, window_bounds = array<i64: 8, 1>}, {transform_indices = @transform_2, window_bounds = array<i64: 8, 1>}, {transform_indices = @transform_3, window_bounds = array<i64: 1, 1, 128>}]} {
    %c0 = arith.constant 0 : index
    %c0_0 = arith.constant 0 : index
    %0 = vector.load %arg1[%c0, %c0_0] : memref<8x16xf32, #tpu.memory_space<vmem>>, vector<8x16xf32>
    %c0_1 = arith.constant 0 : index
    %c0_2 = arith.constant 0 : index
    %1 = vector.load %arg2[%c0_1, %c0_2] : memref<8x1xf32, #tpu.memory_space<vmem>>, vector<8x1xf32>
    %c0_3 = arith.constant 0 : index
    %c0_4 = arith.constant 0 : index
    %2 = vector.load %arg3[%c0_3, %c0_4] : memref<8x1xi32, #tpu.memory_space<vmem>>, vector<8x1xi32>
    %3 = tpu.iota {dimensions = array<i32: 1>} : vector<8x16xi32>
    %4 = vector.broadcast %2 : vector<8x1xi32> to vector<8x16xi32>
    %5 = arith.cmpi eq, %3, %4 : vector<8x16xi32>
    %c8_i32 = arith.constant 8 : i32
    %6 = arith.muli %arg0, %c8_i32 : i32
    %7 = tpu.iota {dimensions = array<i32: 0>} : vector<8x1xi32>
    %8 = vector.broadcast %6 : i32 to vector<8x1xi32>
    %9 = arith.addi %8, %7 : vector<8x1xi32>
    %c12_i32 = arith.constant 12 : i32
    %10 = vector.broadcast %c12_i32 : i32 to vector<8x1xi32>
    %11 = arith.cmpi slt, %9, %10 : vector<8x1xi32>
    %12 = vector.shape_cast %1 : vector<8x1xf32> to vector<8x1xf32>
    %13 = vector.broadcast %12 : vector<8x1xf32> to vector<8x16xf32>
    %14 = arith.select %5, %13, %0 : vector<8x16xi1>, vector<8x16xf32>
    %cst = arith.constant 0.000000e+00 : f32
    %15 = vector.shape_cast %11 : vector<8x1xi1> to vector<8x1xi1>
    %16 = vector.broadcast %15 : vector<8x1xi1> to vector<8x16xi1>
    %17 = vector.broadcast %cst : f32 to vector<8x16xf32>
    %18 = arith.select %16, %14, %17 : vector<8x16xi1>, vector<8x16xf32>
    %cst_5 = arith.constant 0.000000e+00 : f32
    %19 = vector.broadcast %cst_5 : f32 to vector<8x1xf32>
    %20 = arith.select %11, %1, %19 : vector<8x1xi1>, vector<8x1xf32>
    %cst_6 = arith.constant dense<0xFF800000> : vector<8xf32>
    %21 = vector.multi_reduction <maximumf>, %18, %cst_6 [1] : vector<8x16xf32> to vector<8xf32>
    %22 = vector.shape_cast %21 : vector<8xf32> to vector<8x1xf32>
    %23 = vector.broadcast %22 : vector<8x1xf32> to vector<8x16xf32>
    %24 = arith.subf %18, %23 : vector<8x16xf32>
    %25 = math.exp %24 : vector<8x16xf32>
    %cst_7 = arith.constant dense<0.000000e+00> : vector<8xf32>
    %26 = vector.multi_reduction <add>, %25, %cst_7 [1] : vector<8x16xf32> to vector<8xf32>
    %27 = vector.shape_cast %26 : vector<8xf32> to vector<8x1xf32>
    %28 = math.log %27 : vector<8x1xf32>
    %29 = arith.subf %20, %22 : vector<8x1xf32>
    %30 = arith.subf %29, %28 : vector<8x1xf32>
    %cst_8 = arith.constant 0.000000e+00 : f32
    %31 = vector.broadcast %cst_8 : f32 to vector<8x1xf32>
    %32 = arith.subf %31, %30 : vector<8x1xf32>
    %cst_9 = arith.constant 0.000000e+00 : f32
    %33 = vector.broadcast %cst_9 : f32 to vector<8x1xf32>
    %34 = arith.select %11, %32, %33 : vector<8x1xi1>, vector<8x1xf32>
    %35 = vector.shape_cast %34 : vector<8x1xf32> to vector<1x8x1xf32>
    %cst_10 = arith.constant dense<0.000000e+00> : vector<1xf32>
    %36 = vector.multi_reduction <add>, %35, %cst_10 [1, 2] : vector<1x8x1xf32> to vector<1xf32>
    %37 = vector.shape_cast %36 : vector<1xf32> to vector<1x1x1xf32>
    %38 = vector.extract %37[0, 0, 0] : f32 from vector<1x1x1xf32>
    %39 = vector.broadcast %38 : f32 to vector<1x1x128xf32>
    %c0_11 = arith.constant 0 : index
    %c0_12 = arith.constant 0 : index
    %c0_13 = arith.constant 0 : index
    %40 = vector.load %arg4[%c0_11, %c0_12, %c0_13] : memref<1x1x128xf32, #tpu.memory_space<vmem>>, vector<1x1x128xf32>
    tpu.vector_store %arg4[%c0_11, %c0_12, %c0_13], %39 {strides = array<i32>} : memref<1x1x128xf32, #tpu.memory_space<vmem>>, vector<1x1x128xf32>,
    return
  }
  func.func @transform_0(%arg0: i32) -> (i32, i32) {
    %c0_i32 = arith.constant 0 : i32
    %c0_i32_0 = arith.constant 0 : i32
    return %arg0, %c0_i32 : i32, i32
  }
  func.func @transform_1(%arg0: i32) -> (i32, i32) {
    %c0_i32 = arith.constant 0 : i32
    %c0_i32_0 = arith.constant 0 : i32
    return %arg0, %c0_i32 : i32, i32
  }
  func.func @transform_2(%arg0: i32) -> (i32, i32) {
    %c0_i32 = arith.constant 0 : i32
    %c0_i32_0 = arith.constant 0 : i32
    return %arg0, %c0_i32 : i32, i32
  }
  func.func @transform_3(%arg0: i32) -> (i32, i32, i32) {
    %c0_i32 = arith.constant 0 : i32
    %c0_i32_0 = arith.constant 0 : i32
    %c0_i32_1 = arith.constant 0 : i32
    return %arg0, %c0_i32, %c0_i32_0 : i32, i32, i32
  }
}

</mosaic_0001>

<llo_original>
// kernel: tpu_custom_call.1
$region0: #{tpu_custom_call.1}
  #allocation0 [shape = 'u32[]', space=smem, size = 0x4, offset = 0x4, fixed_abs, tag = 'smem constant byte address 0x4 - core index']
  #allocation1 [shape = 'u32[144,128]{1,0:T(1,128)}', space=vmem, size = 0x12000, scoped, tag = 'internal scratch']
  %s0 = inlined_call_operand.vmem [shape: f32[12,16], index: 0, kind: input, shape index: {}]
  %s1 = inlined_call_operand.vmem [shape: f32[12,1], index: 1, kind: input, shape index: {}]
  %s2 = inlined_call_operand.vmem [shape: s32[12,1], index: 2, kind: input, shape index: {}]
  %s3 = inlined_call_operand.hbm [shape: f32[2,1,128], index: 3, kind: output, shape index: {}]
  %s4 = sld [smem:[#allocation0]]
  $region45: #{tpu_custom_call.1} parent=0
    _
  %s6 = ssub.s32 1, %s4
  %s7 = scalar_select 0, %s6, %s4
  $region1: #{tpu_custom_call.1} parent=0
    #allocation2 [shape = 'u8[1024]{0}', space=vmem, size = 0x400, scoped, tag = 'output window, operand 0']
    #allocation3 [shape = 's32[2]{0}', space=sflag, size = 0x8, scoped, tag = 'scoped memory for tpu_custom_call.1']
    %8 = vsyncpa [#allocation3], 0
    %s9 = scalar_lea.sflag [#allocation3], 1
    %10 = vsyncpa %s9, 0
    loop: start=0, step=1, limit=4
    $region2: #{tpu_custom_call.1} parent=1 // loop_pre_header
      _
    $region3: #{tpu_custom_call.1} parent=1 // loop_header
      %s12 = sphi 0, %s16
      %p13 = scmp.ge.s32.totalorder %s12, 4
      %s22 = sphi 0, %s24
      %s25 = sphi 0, %s22
      %s26 = sphi 0, %s25
      %s42 = sphi 0, %s26
      %s48 = sphi 0, %s50
      %s51 = sphi 0, %s48
      %s52 = sphi 0, %s51
      %s68 = sphi 0, %s52
      %s74 = sphi 0, %s76
      %s77 = sphi 0, %s74
      %s78 = sphi 0, %s77
      %s94 = sphi 0, %s78
      %s100 = sphi 0, %s102
      %s103 = sphi 0, %s100
      %s104 = sphi 0, %s103
      %s120 = sphi 0, %s104
    $region4: #{tpu_custom_call.1} parent=1 // loop_header_branch
      %15 = sbr.rel (%p13) target = $region8
    $region5: #{tpu_custom_call.1} parent=1 // loop_body
      %s17 = ssub.s32 %s12, 1
      %s18 = ssub.s32 %s12, 2
      %s19 = sadd.s32 %s12, 1
      %s20 = ssub.s32 %s12, %s19
      %p21 = scmp.eq.s32.totalorder %s20, 0
      %s23 = sadd.s32 %s22, 1
      %s24 = scalar_select %p21, %s22, %s23
      %p27 = pneg %p21
      %p28 = scmp.eq.s32.totalorder %s12, 1
      %p29 = por %p27, %p28
      %p30 = scmp.ne.s32.totalorder %s22, %s25
      %p31 = scmp.eq.s32.totalorder %s12, 0
      %p32 = por %p30, %p31
      %p33 = scmp.ne.s32.totalorder %s22, %s25
      %p34 = scmp.eq.s32.totalorder %s17, 1
      %p35 = por %p33, %p34
      %p36 = scmp.ne.s32.totalorder %s25, %s26
      %p37 = scmp.eq.s32.totalorder %s17, 0
      %p38 = por %p36, %p37
      %p39 = scmp.ne.s32.totalorder %s25, %s26
      %p40 = scmp.eq.s32.totalorder %s18, 1
      %p41 = por %p39, %p40
      %p43 = scmp.ne.s32.totalorder %s26, %s42
      %p44 = scmp.eq.s32.totalorder %s18, 0
      %p45 = por %p43, %p44
      %s46 = ssub.s32 %s12, %s19
      %p47 = scmp.eq.s32.totalorder %s46, 0
      %s49 = sadd.s32 %s48, 1
      %s50 = scalar_select %p47, %s48, %s49
      %p53 = pneg %p47
      %p54 = scmp.eq.s32.totalorder %s12, 1
      %p55 = por %p53, %p54
      %p56 = scmp.ne.s32.totalorder %s48, %s51
      %p57 = scmp.eq.s32.totalorder %s12, 0
      %p58 = por %p56, %p57
      %p59 = scmp.ne.s32.totalorder %s48, %s51
      %p60 = scmp.eq.s32.totalorder %s17, 1
      %p61 = por %p59, %p60
      %p62 = scmp.ne.s32.totalorder %s51, %s52
      %p63 = scmp.eq.s32.totalorder %s17, 0
      %p64 = por %p62, %p63
      %p65 = scmp.ne.s32.totalorder %s51, %s52
      %p66 = scmp.eq.s32.totalorder %s18, 1
      %p67 = por %p65, %p66
      %p69 = scmp.ne.s32.totalorder %s52, %s68
      %p70 = scmp.eq.s32.totalorder %s18, 0
      %p71 = por %p69, %p70
      %s72 = ssub.s32 %s12, %s19
      %p73 = scmp.eq.s32.totalorder %s72, 0
      %s75 = sadd.s32 %s74, 1
      %s76 = scalar_select %p73, %s74, %s75
      %p79 = pneg %p73
      %p80 = scmp.eq.s32.totalorder %s12, 1
      %p81 = por %p79, %p80
      %p82 = scmp.ne.s32.totalorder %s74, %s77
      %p83 = scmp.eq.s32.totalorder %s12, 0
      %p84 = por %p82, %p83
      %p85 = scmp.ne.s32.totalorder %s74, %s77
      %p86 = scmp.eq.s32.totalorder %s17, 1
      %p87 = por %p85, %p86
      %p88 = scmp.ne.s32.totalorder %s77, %s78
      %p89 = scmp.eq.s32.totalorder %s17, 0
      %p90 = por %p88, %p89
      %p91 = scmp.ne.s32.totalorder %s77, %s78
      %p92 = scmp.eq.s32.totalorder %s18, 1
      %p93 = por %p91, %p92
      %p95 = scmp.ne.s32.totalorder %s78, %s94
      %p96 = scmp.eq.s32.totalorder %s18, 0
      %p97 = por %p95, %p96
      %s98 = ssub.s32 %s12, %s19
      %p99 = scmp.eq.s32.totalorder %s98, 0
      %s101 = sadd.s32 %s100, 1
      %s102 = scalar_select %p99, %s100, %s101
      %p105 = pneg %p99
      %p106 = scmp.eq.s32.totalorder %s12, 1
      %p107 = por %p105, %p106
      %p108 = scmp.ne.s32.totalorder %s100, %s103
      %p109 = scmp.eq.s32.totalorder %s12, 0
      %p110 = por %p108, %p109
      %p111 = scmp.ne.s32.totalorder %s100, %s103
      %p112 = scmp.eq.s32.totalorder %s17, 1
      %p113 = por %p111, %p112
      %p114 = scmp.ne.s32.totalorder %s103, %s104
      %p115 = scmp.eq.s32.totalorder %s17, 0
      %p116 = por %p114, %p115
      %p117 = scmp.ne.s32.totalorder %s103, %s104
      %p118 = scmp.eq.s32.totalorder %s18, 1
      %p119 = por %p117, %p118
      %p121 = scmp.ne.s32.totalorder %s104, %s120
      %p122 = scmp.eq.s32.totalorder %s18, 0
      %p123 = por %p121, %p122
      %p124 = scmp.le.s32.totalorder 1, %s12
      %p125 = scmp.lt.s32.totalorder %s12, 3
      %p126 = pnand %p124, %p125
      %p127 = pneg %p126
      // Predicated region
      $region9: #{tpu_custom_call.1} parent=5 // pred_check
        _
      $region10: #{tpu_custom_call.1} parent=5 // pred_check_branch
        %129 = sbr.rel (%p126) target = $region12
      $region11: #{tpu_custom_call.1} parent=5 // pred_region
        %s130 = ssub.s32 %s12, 1
      $region12: #{tpu_custom_call.1} parent=5 // pred_fallthru
        _
      %p131 = scmp.lt.s32.totalorder %s12, 2
      // Predicated region
      $region13: #{tpu_custom_call.1} parent=5 // pred_check
        %p132 = pneg %p131
      $region14: #{tpu_custom_call.1} parent=5 // pred_check_branch
        %134 = sbr.rel (%p132) target = $region16
      $region15: #{tpu_custom_call.1} parent=5 // pred_region
        // Predicated region
        $region17: #{tpu_custom_call.1} parent=15 // pred_check
          %p135 = pneg %p32
        $region18: #{tpu_custom_call.1} parent=15 // pred_check_branch
          %137 = sbr.rel (%p135) target = $region20
        $region19: #{tpu_custom_call.1} parent=15 // pred_region
          %p138 = scmp.lt.s32.totalorder %s12, 1
          %s139 = scalar_select %p138, %s12, 1
          %s140 = smul.addr %s139, 8
          %s141 = scalar_lea.vmem %s0, %s140
        $region20: #{tpu_custom_call.1} parent=15 // pred_fallthru
          _
        // Predicated region
        $region21: #{tpu_custom_call.1} parent=15 // pred_check
          %p142 = pneg %p58
        $region22: #{tpu_custom_call.1} parent=15 // pred_check_branch
          %144 = sbr.rel (%p142) target = $region24
        $region23: #{tpu_custom_call.1} parent=15 // pred_region
          %p145 = scmp.lt.s32.totalorder %s12, 1
          %s146 = scalar_select %p145, %s12, 1
          %s147 = smul.addr %s146, 8
          %s148 = scalar_lea.vmem %s1, %s147
        $region24: #{tpu_custom_call.1} parent=15 // pred_fallthru
          _
        // Predicated region
        $region25: #{tpu_custom_call.1} parent=15 // pred_check
          %p149 = pneg %p84
        $region26: #{tpu_custom_call.1} parent=15 // pred_check_branch
          %151 = sbr.rel (%p149) target = $region28
        $region27: #{tpu_custom_call.1} parent=15 // pred_region
          %p152 = scmp.lt.s32.totalorder %s12, 1
          %s153 = scalar_select %p152, %s12, 1
          %s154 = smul.addr %s153, 8
          %s155 = scalar_lea.vmem %s2, %s154
        $region28: #{tpu_custom_call.1} parent=15 // pred_fallthru
          _
      $region16: #{tpu_custom_call.1} parent=5 // pred_fallthru
        _
      %p156 = scmp.le.s32.totalorder 1, %s12
      %p157 = scmp.lt.s32.totalorder %s12, 3
      %p158 = pnand %p156, %p157
      %p159 = pneg %p158
      // Predicated region
      $region29: #{tpu_custom_call.1} parent=5 // pred_check
        _
      $region30: #{tpu_custom_call.1} parent=5 // pred_check_branch
        %161 = sbr.rel (%p158) target = $region32
      $region31: #{tpu_custom_call.1} parent=5 // pred_region
        %s162 = ssub.s32 %s12, 1
        %p163 = scmp.lt.s32.totalorder %s17, 1
        %s164 = scalar_select %p163, %s17, 1
        %s165 = smul.addr %s164, 8
        %s166 = scalar_lea.vmem %s0, %s165
        %p167 = pneg %p38
        %p168 = pneg %p35
        %p169 = scmp.lt.s32.totalorder %s17, 1
        %s170 = scalar_select %p169, %s17, 1
        %s171 = smul.addr %s170, 8
        %s172 = scalar_lea.vmem %s1, %s171
        %p173 = pneg %p64
        %p174 = pneg %p61
        %p175 = scmp.lt.s32.totalorder %s17, 1
        %s176 = scalar_select %p175, %s17, 1
        %s177 = smul.addr %s176, 8
        %s178 = scalar_lea.vmem %s2, %s177
        %p179 = pneg %p90
        %p180 = pneg %p87
        %p181 = pneg %p116
        %p182 = pneg %p113
        %s183 = sand.u32 %s103, 1
        %s184 = scalar_lea.sflag [#allocation3], %s183
        %s185 = sand.u32 %s103, 1
        %s186 = scalar_lea.vmem [#allocation2], %s185
        %p187 = scmp.lt.s32.totalorder %s17, 1
        %s188 = scalar_select %p187, %s17, 1
        %s189 = smul.addr %s188, 8
        %s190 = scalar_lea.vmem %s0, %s189
        %p191 = scmp.lt.s32.totalorder %s17, 1
        %s192 = scalar_select %p191, %s17, 1
        %s193 = smul.addr %s192, 8
        %s194 = scalar_lea.vmem %s1, %s193
        %p195 = scmp.lt.s32.totalorder %s17, 1
        %s196 = scalar_select %p195, %s17, 1
        %s197 = smul.addr %s196, 8
        %s198 = scalar_lea.vmem %s2, %s197
        %v199 = vld [vmem:[%s190] sm:$0xff]
        %v200 = vld [vmem:[%s194] sm:$0xff]
        %v201 = vld [vmem:[%s198] sm:$0xff]
        %v202 = vlaneseq
        %v203 = vand.u32 %v202, 127
        %204 = vset.pattern.permute.xlu0 0
        %205 = vperm.xlu0 %204, %v201
        %v206 = vpop.permute.xlu0 %205
        %vm207 = vcmp.eq.s32.totalorder %v203, %v206
        %s208 = smul.u32 %s17, 8
        %v209 = vlaneseq
        %v210 = vshrl.u32 %v209, 7
        %v211 = vstv %s208
        %v212 = vadd.s32 %v211, %v210
        %vm213 = vcmp.lt.s32.totalorder %v212, 12
        %215 = vset.pattern.permute.xlu0 0
        %216 = vperm.xlu0 %215, %v200
        %v217 = vpop.permute.xlu0 %216
        %v219 = vsel %vm207, %v217, %v199
        %v220 = vsel %vm213, 1, 0
        %vm221 = vcmp.eq.s32.totalorder %v220, 1
        %v222 = vsel %vm221, %v219, 0.0
        %v223 = vsel %vm213, %v200, 0.0
        %vm224 = vcmask 130048
        %v225 = vsel %vm224, %v222, -inf
        %226 = vmax.xlane.f32.xlu0 %v225
        %v227 = vpop.xlane.xlu0 %226
        %v228 = vsub.f32 %v222, %v227
        %v229 = vmul.f32 %v228, 1.442695
        %v230 = vpow.pop %v229
        %v231 = vsel %vm224, %v230, 0.0
        %232 = vadd.xlane.f32.xlu0 %v231
        %v233 = vpop.xlane.xlu0 %232
        %v234 = vlog2.pop %v233
        %v235 = vmul.f32 %v234, 0.6931472
        %v236 = vsub.f32 %v223, %v227
        %v237 = vsub.f32 %v236, %v235
        %v238 = vsub.f32 0.0, %v237
        %v239 = vsel %vm213, %v238, 0.0
        %vm240 = vcmask 7168
        %v241 = vsel %vm240, %v239, 0.0
        %242 = vadd.xlane.f32.xlu0 %v241
        %v243 = vpop.xlane.xlu0 %242
        %v244 = vrot.slane %v243, 4
        %v245 = vadd.f32 %v243, %v244
        %v246 = vrot.slane %v245, 2
        %v247 = vadd.f32 %v245, %v246
        %v248 = vrot.slane %v247, 1
        %v249 = vadd.f32 %v247, %v248
        %s250 = vtos %v249
        %v251 = vstv %s250
        %252 = vst [vmem:[%s186] sm:$0x1] %v251
        %s253 = sand.u32 %s103, 1
        %s254 = scalar_lea.sflag [#allocation3], %s253
        %s255 = sand.u32 %s103, 1
        %s256 = scalar_lea.vmem [#allocation2], %s255
        // Predicated region
        $region33: #{tpu_custom_call.1} parent=31 // pred_check
          %p257 = pneg %p113
        $region34: #{tpu_custom_call.1} parent=31 // pred_check_branch
          %259 = sbr.rel (%p257) target = $region36
        $region35: #{tpu_custom_call.1} parent=31 // pred_region
          %s261 = ssub.s32 16, 16
          %262 = vsyncadd %s254, %s261
          %s263 = smul.addr %s17, 16
          %s264 = scalar_lea.hbm %s3, %s263
          %s266 = sshll.u32 %s256, 4
          %s267 = int_to_ptr.vmem [resolvable:$true] %s266
          %269 = dma.vmem_to_hbm [thread:$0]  %s267, 16, %s264, %s254
        $region36: #{tpu_custom_call.1} parent=31 // pred_fallthru
          _
      $region32: #{tpu_custom_call.1} parent=5 // pred_fallthru
        _
      %p270 = scmp.le.s32.totalorder 2, %s12
      // Predicated region
      $region37: #{tpu_custom_call.1} parent=5 // pred_check
        %p271 = pneg %p270
      $region38: #{tpu_custom_call.1} parent=5 // pred_check_branch
        %273 = sbr.rel (%p271) target = $region40
      $region39: #{tpu_custom_call.1} parent=5 // pred_region
        %s274 = ssub.s32 %s12, 2
        // Predicated region
        $region41: #{tpu_custom_call.1} parent=39 // pred_check
          %p275 = pneg %p119
        $region42: #{tpu_custom_call.1} parent=39 // pred_check_branch
          %277 = sbr.rel (%p275) target = $region44
        $region43: #{tpu_custom_call.1} parent=39 // pred_region
          %s278 = sand.u32 %s104, 1
          %s279 = scalar_lea.sflag [#allocation3], %s278
          %s280 = sand.u32 %s104, 1
          %s281 = scalar_lea.vmem [#allocation2], %s280
          %282 = dma.done %s279, 16
        $region44: #{tpu_custom_call.1} parent=39 // pred_fallthru
          _
      $region40: #{tpu_custom_call.1} parent=5 // pred_fallthru
        _
    $region6: #{tpu_custom_call.1} parent=1 // loop_footer
      %s16 = sadd.s32 1, %s12
    $region7: #{tpu_custom_call.1} parent=1 // loop_footer_branch
      %11 = sbr.rel target = $region3
    $region8: #{tpu_custom_call.1} parent=1 // loop_exit
      _
    %283 = vsyncpa [#allocation3], 1
    %s284 = scalar_lea.sflag [#allocation3], 1
    %285 = vsyncpa %s284, 1

</llo_original>
